<compile_context>
chip_gen: v7x
topology: tpu7x:2x2x1
jax: 0.10.0
libtpu: 0.0.40
codegen_flags: <defaults>
</compile_context>

<pallas_src>
import jax
import jax.numpy as jnp
from jax.experimental import pallas as pl
from jax.experimental.pallas import tpu as pltpu


def feedforward_conv_kernel(w_ref, b_ref, x_ref, o_ref):
    """w_ref: (3,) f32 SMEM; b_ref: (1,) f32 SMEM; x_ref/o_ref: (Bb, N, D) VMEM."""
    x = x_ref[...]                              # (Bb, N, D), loaded once
    bb, n, d = x.shape

    w0 = w_ref[0]
    w1 = w_ref[1]
    w2 = w_ref[2]
    bias = b_ref[0]

    # Shifted copies of the block along the sequence axis with the conv's zero
    # padding baked in:
    #   prev[:, i] = x[:, i-1] for i >= 2, else 0   (top pad of the feature block)
    #   nxt [:, i] = x[:, i+1] for i <= n-2, else 0 (bottom pad)
    # TODO(synk): replace these concatenates with pltpu.roll + where once unaligned
    # sublane rotates are guaranteed to lower for these shapes (saves two VMEM copies).
    zero1 = jnp.zeros((bb, 1, d), dtype=x.dtype)
    zero2 = jnp.zeros((bb, 2, d), dtype=x.dtype)
    prev = jnp.concatenate([zero2, x[:, 1:-1, :]], axis=1)
    nxt = jnp.concatenate([x[:, 1:, :], zero1], axis=1)

    conv = (w0 * prev + w1 * x + w2 * nxt + bias).astype(x.dtype)

    # Row 0 of every batch element is the cls token: pass it through unchanged.
    # Everything else takes the conv result. Single aligned full-block store.
    pos = jax.lax.broadcasted_iota(jnp.int32, (bb, n, d), 1)
    o_ref[...] = jnp.where(pos == 0, x, conv)


def _choose_batch_block(B, N, D, itemsize, target_bytes=4 << 20):
    """Largest divisor of B whose (Bb, N, D) block stays <= target_bytes, while
    keeping >= 2 grid steps when possible (so v7x can shard across both cores)."""
    per_batch = max(N * D * itemsize, 1)
    bb = 1
    for cand in range(1, B + 1):
        if B % cand == 0 and cand * per_batch <= target_bytes:
            bb = cand
    if bb == B and B > 1:
        for cand in range(B // 2, 0, -1):
            if B % cand == 0:
                bb = cand
                break
    return bb


def feedforward_conv(x, conv_weight, conv_bias):
    """x: (B, N, D); conv_weight: (1, 1, 3, 1); conv_bias: (1,)."""
    B, N, D = x.shape
    assert N >= 2, "need the cls token plus at least one feature token"

    w = conv_weight.reshape(3).astype(jnp.float32)
    b = conv_bias.reshape(1).astype(jnp.float32)

    bb = _choose_batch_block(B, N, D, x.dtype.itemsize)
    grid = (B // bb,)

    return pl.pallas_call(
        feedforward_conv_kernel,
        out_shape=jax.ShapeDtypeStruct((B, N, D), x.dtype),
        grid=grid,
        in_specs=[
            pl.BlockSpec(memory_space=pltpu.MemorySpace.SMEM),   # conv taps (scalars)
            pl.BlockSpec(memory_space=pltpu.MemorySpace.SMEM),   # conv bias (scalar)
            pl.BlockSpec((bb, N, D), lambda i: (i, 0, 0)),       # batch-fused block
        ],
        out_specs=pl.BlockSpec((bb, N, D), lambda i: (i, 0, 0)),
        compiler_params=pltpu.CompilerParams(
            dimension_semantics=("parallel",),
            vmem_limit_bytes=32 * 1024 * 1024,
        ),
    )(w, b, x)


def feedforward_conv_reference(x, conv_weight, conv_bias):
    """Pure-JAX reference mirroring the PyTorch forward."""
    cls = x[:, 0:1]                                        # (B, 1, D)
    feat = x[:, 1:]                                        # (B, n, D)
    w = conv_weight.reshape(3)
    padded = jnp.pad(feat, ((0, 0), (1, 1), (0, 0)))       # zero-pad seq axis
    out = (w[0] * padded[:, :-2]
           + w[1] * padded[:, 1:-1]
           + w[2] * padded[:, 2:]
           + conv_bias.reshape(()))
    return jnp.concatenate([cls, out], axis=1)


if __name__ == "__main__":
    key = jax.random.PRNGKey(0)
    kx, kw, kb = jax.random.split(key, 3)

    B, N, D = 2, 9, 32   # 1 cls token + 8 feature tokens, embed dim 32
    x = jax.random.normal(kx, (B, N, D), dtype=jnp.float32)

    # Deterministic synthetic Conv2d(1, 1, [3, 1]) parameters (shapes from __init__).
    conv_weight = jax.random.normal(kw, (1, 1, 3, 1), dtype=jnp.float32) * 0.5
    conv_bias = jax.random.normal(kb, (1,), dtype=jnp.float32) * 0.1

    out = feedforward_conv(x, conv_weight, conv_bias)
    out = jax.block_until_ready(out)

    ref = feedforward_conv_reference(x, conv_weight, conv_bias)
    assert out.shape == (B, N, D)
    assert jnp.allclose(out, ref, atol=1e-5, rtol=1e-5), "mismatch vs reference"

    print("KERNEL_OK")
</pallas_src>

<mosaic_0001>
module attributes {stable_mosaic.version = 11 : i64} {
  func.func @feedforward_conv_kernel(%arg0: i32, %arg1: memref<3xf32, #tpu.memory_space<smem>>, %arg2: memref<1xf32, #tpu.memory_space<smem>>, %arg3: memref<1x9x32xf32, #tpu.memory_space<vmem>>, %arg4: memref<1x9x32xf32, #tpu.memory_space<vmem>>) attributes {dimension_semantics = [#tpu.dimension_semantics<parallel>], iteration_bounds = array<i64: 2>, scalar_prefetch = 0 : i64, scratch_operands = 0 : i64, tpu.core_type = #tpu.core_type<tc>, window_params = [{transform_indices = @transform_0, window_bounds = array<i64: 3>}, {transform_indices = @transform_1, window_bounds = array<i64: 1>}, {transform_indices = @transform_2, window_bounds = array<i64: 1, 9, 32>}, {transform_indices = @transform_3, window_bounds = array<i64: 1, 9, 32>}]} {
    %c0 = arith.constant 0 : index
    %c0_0 = arith.constant 0 : index
    %c0_1 = arith.constant 0 : index
    %0 = vector.load %arg3[%c0, %c0_0, %c0_1] : memref<1x9x32xf32, #tpu.memory_space<vmem>>, vector<1x9x32xf32>
    %c0_2 = arith.constant 0 : index
    %1 = memref.load %arg1[%c0_2] : memref<3xf32, #tpu.memory_space<smem>>
    %c1 = arith.constant 1 : index
    %2 = memref.load %arg1[%c1] : memref<3xf32, #tpu.memory_space<smem>>
    %c2 = arith.constant 2 : index
    %3 = memref.load %arg1[%c2] : memref<3xf32, #tpu.memory_space<smem>>
    %c0_3 = arith.constant 0 : index
    %4 = memref.load %arg2[%c0_3] : memref<1xf32, #tpu.memory_space<smem>>
    %cst = arith.constant 0.000000e+00 : f32
    %5 = vector.broadcast %cst : f32 to vector<1x1x32xf32>
    %cst_4 = arith.constant 0.000000e+00 : f32
    %6 = vector.broadcast %cst_4 : f32 to vector<1x2x32xf32>
    %7 = vector.extract_strided_slice %0 {offsets = [0, 1, 0], sizes = [1, 7, 32], strides = [1, 1, 1]} : vector<1x9x32xf32> to vector<1x7x32xf32>
    %8 = tpu.concatenate %6, %7 in 1 : vector<1x2x32xf32>, vector<1x7x32xf32> -> vector<1x9x32xf32>
    %9 = vector.extract_strided_slice %0 {offsets = [0, 1, 0], sizes = [1, 8, 32], strides = [1, 1, 1]} : vector<1x9x32xf32> to vector<1x8x32xf32>
    %10 = tpu.concatenate %9, %5 in 1 : vector<1x8x32xf32>, vector<1x1x32xf32> -> vector<1x9x32xf32>
    %11 = vector.broadcast %1 : f32 to vector<1x9x32xf32>
    %12 = arith.mulf %11, %8 : vector<1x9x32xf32>
    %13 = vector.broadcast %2 : f32 to vector<1x9x32xf32>
    %14 = arith.mulf %13, %0 : vector<1x9x32xf32>
    %15 = arith.addf %12, %14 : vector<1x9x32xf32>
    %16 = vector.broadcast %3 : f32 to vector<1x9x32xf32>
    %17 = arith.mulf %16, %10 : vector<1x9x32xf32>
    %18 = arith.addf %15, %17 : vector<1x9x32xf32>
    %19 = vector.broadcast %4 : f32 to vector<1x9x32xf32>
    %20 = arith.addf %18, %19 : vector<1x9x32xf32>
    %21 = tpu.iota {dimensions = array<i32: 1>} : vector<1x9x32xi32>
    %c0_i32 = arith.constant 0 : i32
    %22 = vector.broadcast %c0_i32 : i32 to vector<1x9x32xi32>
    %23 = arith.cmpi eq, %21, %22 : vector<1x9x32xi32>
    %24 = arith.select %23, %0, %20 : vector<1x9x32xi1>, vector<1x9x32xf32>
    %c0_5 = arith.constant 0 : index
    %c0_6 = arith.constant 0 : index
    %c0_7 = arith.constant 0 : index
    %25 = vector.load %arg4[%c0_5, %c0_6, %c0_7] : memref<1x9x32xf32, #tpu.memory_space<vmem>>, vector<1x9x32xf32>
    tpu.vector_store %arg4[%c0_5, %c0_6, %c0_7], %24 {strides = array<i32>} : memref<1x9x32xf32, #tpu.memory_space<vmem>>, vector<1x9x32xf32>,
    return
  }
  func.func @transform_0(%arg0: i32) -> i32 {
    %c0_i32 = arith.constant 0 : i32
    %c0_i32_0 = arith.constant 0 : i32
    return %c0_i32 : i32
  }
  func.func @transform_1(%arg0: i32) -> i32 {
    %c0_i32 = arith.constant 0 : i32
    %c0_i32_0 = arith.constant 0 : i32
    return %c0_i32 : i32
  }
  func.func @transform_2(%arg0: i32) -> (i32, i32, i32) {
    %c0_i32 = arith.constant 0 : i32
    %c0_i32_0 = arith.constant 0 : i32
    %c0_i32_1 = arith.constant 0 : i32
    return %arg0, %c0_i32, %c0_i32_0 : i32, i32, i32
  }
  func.func @transform_3(%arg0: i32) -> (i32, i32, i32) {
    %c0_i32 = arith.constant 0 : i32
    %c0_i32_0 = arith.constant 0 : i32
    %c0_i32_1 = arith.constant 0 : i32
    return %arg0, %c0_i32, %c0_i32_0 : i32, i32, i32
  }
}

</mosaic_0001>

<llo_original>
// kernel: tpu_custom_call.1
$region0: #{tpu_custom_call.1}
  #allocation0 [shape = 'u32[]', space=smem, size = 0x4, offset = 0x4, fixed_abs, tag = 'smem constant byte address 0x4 - core index']
  #allocation1 [shape = 'u32[144,128]{1,0:T(1,128)}', space=vmem, size = 0x12000, scoped, tag = 'internal scratch']
  #allocation2 [shape = 'f32[1]{0:T(128)S(6)}', space=smem, size = 0x200, scoped, tag = 'scoped memory for tpu_custom_call.1']
  %s0 = inlined_call_operand.vmem [shape: f32[3], index: 0, kind: input, shape index: {}]
  %s1 = inlined_call_operand.<no memory space> [shape: f32[1], index: 1, kind: input, shape index: {}]
  %s2 = inlined_call_operand.vmem [shape: f32[2,9,32], index: 2, kind: input, shape index: {}]
  %s3 = inlined_call_operand.vmem [shape: f32[2,9,32], index: 3, kind: output, shape index: {}]
  %s4 = sld [smem:[#allocation0]]
  $region49: #{tpu_custom_call.1} parent=0
    _
  %s6 = ssub.s32 1, %s4
  %s7 = scalar_select 0, %s6, %s4
  %8 = sst [smem:[#allocation2]] %s1
  $region1: #{tpu_custom_call.1} parent=0
    #allocation3 [shape = 'u8[512]{0}', space=smem, size = 0x200, scoped, tag = 'input window, operand 0, single buffered']
    #allocation4 [shape = 's32[2]{0}', space=sflag, size = 0x8, scoped, tag = 'scoped memory for tpu_custom_call.1']
    %9 = vsyncpa [#allocation4], 0
    loop: start=0, step=1, limit=4
    $region2: #{tpu_custom_call.1} parent=1 // loop_pre_header
      _
    $region3: #{tpu_custom_call.1} parent=1 // loop_header
      %s11 = sphi 0, %s15
      %p12 = scmp.ge.s32.totalorder %s11, 4
      %s19 = sphi 0, %s19
      %s21 = sphi 0, %s19
      %s22 = sphi 0, %s21
      %s36 = sphi 0, %s22
      %s40 = sphi 0, %s40
      %s42 = sphi 0, %s40
      %s43 = sphi 0, %s42
      %s57 = sphi 0, %s43
      %s63 = sphi 0, %s65
      %s66 = sphi 0, %s63
      %s67 = sphi 0, %s66
      %s83 = sphi 0, %s67
      %s89 = sphi 0, %s91
      %s92 = sphi 0, %s89
      %s93 = sphi 0, %s92
      %s109 = sphi 0, %s93
    $region4: #{tpu_custom_call.1} parent=1 // loop_header_branch
      %14 = sbr.rel (%p12) target = $region8
    $region5: #{tpu_custom_call.1} parent=1 // loop_body
      %s16 = ssub.s32 %s11, 1
      %s17 = ssub.s32 %s11, 2
      %s18 = sadd.s32 %s11, 1
      %s20 = sadd.s32 %s19, 1
      %p23 = scmp.eq.s32.totalorder %s11, 1
      %p24 = scmp.ne.s32.totalorder %s19, %s21
      %p25 = scmp.eq.s32.totalorder %s11, 0
      %p26 = por %p24, %p25
      %p27 = scmp.ne.s32.totalorder %s19, %s21
      %p28 = scmp.eq.s32.totalorder %s16, 1
      %p29 = por %p27, %p28
      %p30 = scmp.ne.s32.totalorder %s21, %s22
      %p31 = scmp.eq.s32.totalorder %s16, 0
      %p32 = por %p30, %p31
      %p33 = scmp.ne.s32.totalorder %s21, %s22
      %p34 = scmp.eq.s32.totalorder %s17, 1
      %p35 = por %p33, %p34
      %p37 = scmp.ne.s32.totalorder %s22, %s36
      %p38 = scmp.eq.s32.totalorder %s17, 0
      %p39 = por %p37, %p38
      %s41 = sadd.s32 %s40, 1
      %p44 = scmp.eq.s32.totalorder %s11, 1
      %p45 = scmp.ne.s32.totalorder %s40, %s42
      %p46 = scmp.eq.s32.totalorder %s11, 0
      %p47 = por %p45, %p46
      %p48 = scmp.ne.s32.totalorder %s40, %s42
      %p49 = scmp.eq.s32.totalorder %s16, 1
      %p50 = por %p48, %p49
      %p51 = scmp.ne.s32.totalorder %s42, %s43
      %p52 = scmp.eq.s32.totalorder %s16, 0
      %p53 = por %p51, %p52
      %p54 = scmp.ne.s32.totalorder %s42, %s43
      %p55 = scmp.eq.s32.totalorder %s17, 1
      %p56 = por %p54, %p55
      %p58 = scmp.ne.s32.totalorder %s43, %s57
      %p59 = scmp.eq.s32.totalorder %s17, 0
      %p60 = por %p58, %p59
      %s61 = ssub.s32 %s11, %s18
      %p62 = scmp.eq.s32.totalorder %s61, 0
      %s64 = sadd.s32 %s63, 1
      %s65 = scalar_select %p62, %s63, %s64
      %p68 = pneg %p62
      %p69 = scmp.eq.s32.totalorder %s11, 1
      %p70 = por %p68, %p69
      %p71 = scmp.ne.s32.totalorder %s63, %s66
      %p72 = scmp.eq.s32.totalorder %s11, 0
      %p73 = por %p71, %p72
      %p74 = scmp.ne.s32.totalorder %s63, %s66
      %p75 = scmp.eq.s32.totalorder %s16, 1
      %p76 = por %p74, %p75
      %p77 = scmp.ne.s32.totalorder %s66, %s67
      %p78 = scmp.eq.s32.totalorder %s16, 0
      %p79 = por %p77, %p78
      %p80 = scmp.ne.s32.totalorder %s66, %s67
      %p81 = scmp.eq.s32.totalorder %s17, 1
      %p82 = por %p80, %p81
      %p84 = scmp.ne.s32.totalorder %s67, %s83
      %p85 = scmp.eq.s32.totalorder %s17, 0
      %p86 = por %p84, %p85
      %s87 = ssub.s32 %s11, %s18
      %p88 = scmp.eq.s32.totalorder %s87, 0
      %s90 = sadd.s32 %s89, 1
      %s91 = scalar_select %p88, %s89, %s90
      %p94 = pneg %p88
      %p95 = scmp.eq.s32.totalorder %s11, 1
      %p96 = por %p94, %p95
      %p97 = scmp.ne.s32.totalorder %s89, %s92
      %p98 = scmp.eq.s32.totalorder %s11, 0
      %p99 = por %p97, %p98
      %p100 = scmp.ne.s32.totalorder %s89, %s92
      %p101 = scmp.eq.s32.totalorder %s16, 1
      %p102 = por %p100, %p101
      %p103 = scmp.ne.s32.totalorder %s92, %s93
      %p104 = scmp.eq.s32.totalorder %s16, 0
      %p105 = por %p103, %p104
      %p106 = scmp.ne.s32.totalorder %s92, %s93
      %p107 = scmp.eq.s32.totalorder %s17, 1
      %p108 = por %p106, %p107
      %p110 = scmp.ne.s32.totalorder %s93, %s109
      %p111 = scmp.eq.s32.totalorder %s17, 0
      %p112 = por %p110, %p111
      %p113 = scmp.le.s32.totalorder 1, %s11
      %p114 = scmp.lt.s32.totalorder %s11, 3
      %p115 = pnand %p113, %p114
      %p116 = pneg %p115
      // Predicated region
      $region9: #{tpu_custom_call.1} parent=5 // pred_check
        _
      $region10: #{tpu_custom_call.1} parent=5 // pred_check_branch
        %118 = sbr.rel (%p115) target = $region12
      $region11: #{tpu_custom_call.1} parent=5 // pred_region
        %s119 = ssub.s32 %s11, 1
        // Predicated region
        $region13: #{tpu_custom_call.1} parent=11 // pred_check
          %p120 = pneg %p32
        $region14: #{tpu_custom_call.1} parent=11 // pred_check_branch
          %122 = sbr.rel (%p120) target = $region16
        $region15: #{tpu_custom_call.1} parent=11 // pred_region
          %s124 = ssub.s32 16, 16
          %125 = vsyncadd [#allocation4], %s124
          %s127 = sshll.u32 %s0, 4
          %s128 = int_to_ptr.vmem [resolvable:$true] %s127
          %130 = dma.vmem_to_smem %s128, 16, [#allocation3], [#allocation4]
        $region16: #{tpu_custom_call.1} parent=11 // pred_fallthru
          _
        // Predicated region
        $region17: #{tpu_custom_call.1} parent=11 // pred_check
          %p131 = pneg %p53
        $region18: #{tpu_custom_call.1} parent=11 // pred_check_branch
          %133 = sbr.rel (%p131) target = $region20
        $region19: #{tpu_custom_call.1} parent=11 // pred_region
          _
        $region20: #{tpu_custom_call.1} parent=11 // pred_fallthru
          _
      $region12: #{tpu_custom_call.1} parent=5 // pred_fallthru
        _
      %p134 = scmp.lt.s32.totalorder %s11, 2
      // Predicated region
      $region21: #{tpu_custom_call.1} parent=5 // pred_check
        %p135 = pneg %p134
      $region22: #{tpu_custom_call.1} parent=5 // pred_check_branch
        %137 = sbr.rel (%p135) target = $region24
      $region23: #{tpu_custom_call.1} parent=5 // pred_region
        // Predicated region
        $region25: #{tpu_custom_call.1} parent=23 // pred_check
          %p138 = pneg %p73
        $region26: #{tpu_custom_call.1} parent=23 // pred_check_branch
          %140 = sbr.rel (%p138) target = $region28
        $region27: #{tpu_custom_call.1} parent=23 // pred_region
          %p141 = scmp.lt.s32.totalorder %s11, 1
          %s142 = scalar_select %p141, %s11, 1
          %s143 = smul.addr %s142, 2
          %s144 = smul.addr %s143, 8
          %s145 = scalar_lea.vmem %s2, %s144
        $region28: #{tpu_custom_call.1} parent=23 // pred_fallthru
          _
      $region24: #{tpu_custom_call.1} parent=5 // pred_fallthru
        _
      %p146 = scmp.le.s32.totalorder 1, %s11
      %p147 = scmp.lt.s32.totalorder %s11, 3
      %p148 = pnand %p146, %p147
      %p149 = pneg %p148
      // Predicated region
      $region29: #{tpu_custom_call.1} parent=5 // pred_check
        _
      $region30: #{tpu_custom_call.1} parent=5 // pred_check_branch
        %151 = sbr.rel (%p148) target = $region32
      $region31: #{tpu_custom_call.1} parent=5 // pred_region
        %s152 = ssub.s32 %s11, 1
        // Predicated region
        $region33: #{tpu_custom_call.1} parent=31 // pred_check
          %p153 = pneg %p32
        $region34: #{tpu_custom_call.1} parent=31 // pred_check_branch
          %155 = sbr.rel (%p153) target = $region36
        $region35: #{tpu_custom_call.1} parent=31 // pred_region
          %156 = dma.done [#allocation4], 16
        $region36: #{tpu_custom_call.1} parent=31 // pred_fallthru
          _
        %157 = sfence
        %p158 = pneg %p32
        %p159 = pneg %p29
        %p160 = pneg %p53
        %p161 = pneg %p50
        %p162 = scmp.lt.s32.totalorder %s16, 1
        %s163 = scalar_select %p162, %s16, 1
        %s164 = smul.addr %s163, 2
        %s165 = smul.addr %s164, 8
        %s166 = scalar_lea.vmem %s2, %s165
        %p167 = pneg %p79
        %p168 = pneg %p76
        %p169 = pneg %p105
        %p170 = pneg %p102
        %p171 = scmp.lt.s32.totalorder %s16, 1
        %s172 = scalar_select %p171, %s16, 1
        %s173 = smul.addr %s172, 2
        %s174 = smul.addr %s173, 8
        %s175 = scalar_lea.vmem %s3, %s174
        %p176 = scmp.lt.s32.totalorder %s16, 1
        %s177 = scalar_select %p176, %s16, 1
        %s178 = smul.addr %s177, 2
        %s179 = smul.addr %s178, 8
        %s180 = scalar_lea.vmem %s2, %s179
        %p181 = scmp.lt.s32.totalorder %s16, 1
        %s182 = scalar_select %p181, %s16, 1
        %s183 = smul.addr %s182, 2
        %s184 = smul.addr %s183, 8
        %s185 = scalar_lea.vmem %s3, %s184
        %v186 = vld [vmem:[%s180] sm:$0xff]
        %v187 = vld [vmem:[%s180 + $0x8] sm:$0x1]
        %s188 = sld [smem:[#allocation3]]
        %s189 = sld [smem:[#allocation3 + $0x1]]
        %s190 = sld [smem:[#allocation3 + $0x2]]
        %s191 = sld [smem:[#allocation2]]
        %v193 = vrot.slane %v186, 7
        %vm195 = vcmask 1041408
        %v196 = vsel %vm195, 0.0, %v193
        %vm198 = vcmask 1046528
        %v199 = vrot.slane %v186, 1
        %v200 = vrot.slane %v187, 1
        %v201 = vsel %vm198, %v199, %v200
        %v203 = vstv %s188
        %v204 = vmul.f32 %v203, %v196
        %v205 = vmul.f32 %v203, %v193
        %v206 = vstv %s189
        %v207 = vmul.f32 %v206, %v186
        %v208 = vmul.f32 %v206, %v187
        %v209 = vadd.f32 %v204, %v207
        %v210 = vadd.f32 %v205, %v208
        %v211 = vstv %s190
        %v212 = vmul.f32 %v211, %v201
        %v213 = vmul.f32 %v211, 0.0
        %v214 = vadd.f32 %v209, %v212
        %v215 = vadd.f32 %v210, %v213
        %v216 = vstv %s191
        %v217 = vadd.f32 %v214, %v216
        %v218 = vadd.f32 %v215, %v216
        %v219 = vlaneseq
        %v220 = vshrl.u32 %v219, 7
        %v221 = vadd.s32 %v220, 8
        %vm222 = vcmp.eq.s32.totalorder %v220, 0
        %vm223 = vcmp.eq.s32.totalorder %v221, 0
        %v224 = vsel %vm222, %v186, %v217
        %v225 = vsel %vm223, %v187, %v218
        %vm226 = vcmask 261120
        %227 = vst.msk [vmem:[%s185] sm:$0xff] %vm226, %v224
        %vm228 = vcmask 253952
        %229 = vst.msk [vmem:[%s185 + $0x8] sm:$0x1] %vm228, %v225
        %p230 = scmp.lt.s32.totalorder %s16, 1
        %s231 = scalar_select %p230, %s16, 1
        %s232 = smul.addr %s231, 2
        %s233 = smul.addr %s232, 8
        %s234 = scalar_lea.vmem %s3, %s233
        // Predicated region
        $region37: #{tpu_custom_call.1} parent=31 // pred_check
          %p235 = pneg %p102
        $region38: #{tpu_custom_call.1} parent=31 // pred_check_branch
          %237 = sbr.rel (%p235) target = $region40
        $region39: #{tpu_custom_call.1} parent=31 // pred_region
          _
        $region40: #{tpu_custom_call.1} parent=31 // pred_fallthru
          _
      $region32: #{tpu_custom_call.1} parent=5 // pred_fallthru
        _
      %p238 = scmp.le.s32.totalorder 2, %s11
      // Predicated region
      $region41: #{tpu_custom_call.1} parent=5 // pred_check
        %p239 = pneg %p238
      $region42: #{tpu_custom_call.1} parent=5 // pred_check_branch
        %241 = sbr.rel (%p239) target = $region44
      $region43: #{tpu_custom_call.1} parent=5 // pred_region
        %s242 = ssub.s32 %s11, 2
        // Predicated region
        $region45: #{tpu_custom_call.1} parent=43 // pred_check
          %p243 = pneg %p108
        $region46: #{tpu_custom_call.1} parent=43 // pred_check_branch
          %245 = sbr.rel (%p243) target = $region48
        $region47: #{tpu_custom_call.1} parent=43 // pred_region
          %p246 = scmp.lt.s32.totalorder %s17, 1
          %s247 = scalar_select %p246, %s17, 1
          %s248 = smul.addr %s247, 2
          %s249 = smul.addr %s248, 8
          %s250 = scalar_lea.vmem %s3, %s249
        $region48: #{tpu_custom_call.1} parent=43 // pred_fallthru
          _
      $region44: #{tpu_custom_call.1} parent=5 // pred_fallthru
        _
    $region6: #{tpu_custom_call.1} parent=1 // loop_footer
      %s15 = sadd.s32 1, %s11
    $region7: #{tpu_custom_call.1} parent=1 // loop_footer_branch
      %10 = sbr.rel target = $region3
    $region8: #{tpu_custom_call.1} parent=1 // loop_exit
      _
    %251 = vsyncpa [#allocation4], 1
    %s252 = scalar_lea.sflag [#allocation4], 1
    %253 = vsyncpa %s252, 1

</llo_original>
